<compile_context>
chip_gen: v5e
topology: v5e:2x2
jax: 0.10.0
libtpu: 0.0.40
codegen_flags: <defaults>
</compile_context>

<pallas_src>
import functools

import jax
import jax.numpy as jnp
from jax.experimental import pallas as pl
from jax.experimental.pallas import tpu as pltpu

_TILE_VMEM_BUDGET = 12 * 1024 * 1024   # bytes for the double-buffered input pair
_MAX_LANE_TILE = 32768                 # lanes per tile upper bound (sweepable)


def _pick_lane_tile(total, bytes_per_lane, budget_bytes, min_blocks=1):
    """Lane-axis tile: multiple of 128 (or the full extent), sized to a VMEM
    budget, optionally forced to yield >= min_blocks grid blocks (megacore)."""
    cap = (budget_bytes // max(bytes_per_lane, 1)) // 128 * 128
    cap = max(128, min(cap, _MAX_LANE_TILE))
    if min_blocks > 1 and total > 128 * min_blocks:
        per = -(-total // min_blocks)          # ceil(total / min_blocks)
        per = -(-per // 128) * 128             # round up to lane multiple
        cap = min(cap, max(128, per))
    return total if total <= cap else cap


# ----------------------------------------------------------------------------
# Kernels
# ----------------------------------------------------------------------------
def _seg_ce_kernel(scale, ignore, hw, needs_tail, logits_ref, tgt_ref, out_ref):
    """Per-tile partial sums of CE(scale * logits) with ignore_index.

    logits_ref: (1, C, TN)  raw dtype, pixels on lanes, classes on sublanes
    tgt_ref:    (1, 1, TN)  raw target dtype (cast in-kernel)
    out_ref:    (1, 1, 128) f32, lane0 = sum(ce), lane1 = valid count
    """
    j = pl.program_id(1)
    c, tn = logits_ref.shape[1], logits_ref.shape[2]

    def compute(tail):
        x = logits_ref[0].astype(jnp.float32) * scale            # (C, TN)
        t = tgt_ref[0].astype(jnp.int32)                         # (1, TN)
        valid = t != ignore
        if tail:  # only the last tile can have out-of-range lanes
            pos = j * tn + jax.lax.broadcasted_iota(jnp.int32, (1, tn), 1)
            valid = valid & (pos < hw)

        m = jnp.max(x, axis=0, keepdims=True)                    # (1, TN)
        lse = jnp.log(jnp.sum(jnp.exp(x - m), axis=0, keepdims=True)) + m

        cls = jax.lax.broadcasted_iota(jnp.int32, (c, tn), 0)
        tgt_logit = jnp.sum(jnp.where(cls == t, x, 0.0), axis=0, keepdims=True)

        # select (not multiply) so garbage in masked lanes never leaks NaN/Inf
        ce = jnp.where(valid, lse - tgt_logit, 0.0)
        vf = valid.astype(jnp.float32)

        lane = jax.lax.broadcasted_iota(jnp.int32, (1, 1, 128), 2)
        out_ref[...] = jnp.where(lane == 0, jnp.sum(ce),
                                 jnp.where(lane == 1, jnp.sum(vf), 0.0))

    if needs_tail:
        last = pl.num_programs(1) - 1

        @pl.when(j < last)
        def _():
            compute(False)

        @pl.when(j == last)
        def _():
            compute(True)
    else:
        compute(False)


def _ppc_ppd_kernel(inv_temp, ignore, m_total, needs_tail,
                    logits_ref, tgt_ref, out_ref):
    """Per-tile partial sums for PPC (CE on logits/temperature) and PPD.

    logits_ref: (K, TM)   raw dtype, rows on lanes, prototype classes on sublanes
    tgt_ref:    (1, TM)   raw target dtype (cast in-kernel)
    out_ref:    (1, 1, 128) f32, lane0 = sum(ppc), lane1 = sum(ppd), lane2 = cnt
    """
    i = pl.program_id(0)
    k, tm = logits_ref.shape

    def compute(tail):
        x_raw = logits_ref[...].astype(jnp.float32)              # (K, TM)
        t = tgt_ref[...].astype(jnp.int32)                       # (1, TM)
        valid = t != ignore
        if tail:
            pos = i * tm + jax.lax.broadcasted_iota(jnp.int32, (1, tm), 1)
            valid = valid & (pos < m_total)

        # single gather of the raw target logit; scaled version derived from it
        cls = jax.lax.broadcasted_iota(jnp.int32, (k, tm), 0)
        tgt_raw = jnp.sum(jnp.where(cls == t, x_raw, 0.0), axis=0, keepdims=True)

        x = x_raw * inv_temp
        mx = jnp.max(x, axis=0, keepdims=True)
        lse = jnp.log(jnp.sum(jnp.exp(x - mx), axis=0, keepdims=True)) + mx

        ppc = jnp.where(valid, lse - tgt_raw * inv_temp, 0.0)
        ppd = jnp.where(valid, (1.0 - tgt_raw) ** 2, 0.0)
        vf = valid.astype(jnp.float32)

        lane = jax.lax.broadcasted_iota(jnp.int32, (1, 1, 128), 2)
        out_ref[...] = jnp.where(lane == 0, jnp.sum(ppc),
                                 jnp.where(lane == 1, jnp.sum(ppd),
                                           jnp.where(lane == 2, jnp.sum(vf), 0.0)))

    if needs_tail:
        last = pl.num_programs(0) - 1

        @pl.when(i < last)
        def _():
            compute(False)

        @pl.when(i == last)
        def _():
            compute(True)
    else:
        compute(False)


# ----------------------------------------------------------------------------
# Wrappers
# ----------------------------------------------------------------------------
def seg_ce_mean(seg_nchw, target_bhw, scale, ignore):
    """mean_{valid px} CE(scale * seg, target) — NCHW in, no transpose/pad/cast."""
    b, c, h, w = seg_nchw.shape
    hw = h * w
    seg3 = seg_nchw.reshape(b, c, hw)                 # free reshape
    tgt3 = target_bhw.reshape(b, 1, hw)               # native dtype, cast in-kernel

    bytes_per_lane = 2 * (c * seg_nchw.dtype.itemsize + tgt3.dtype.itemsize)
    min_blocks = 2 if b < 2 else 1                    # keep both v7x TCs busy
    tn = _pick_lane_tile(hw, bytes_per_lane, _TILE_VMEM_BUDGET, min_blocks)
    j = pl.cdiv(hw, tn)
    needs_tail = (hw % tn) != 0

    footprint = tn * bytes_per_lane + 2 * 128 * 4     # inputs (2x buffered) + out
    vmem_bytes = int(min(100 * 1024 * 1024, footprint + 8 * 1024 * 1024))

    parts = pl.pallas_call(
        functools.partial(_seg_ce_kernel, float(scale), int(ignore), int(hw),
                          needs_tail),
        out_shape=jax.ShapeDtypeStruct((b * j, 1, 128), jnp.float32),
        grid=(b, j),
        in_specs=[pl.BlockSpec((1, c, tn), lambda bi, ji: (bi, 0, ji)),
                  pl.BlockSpec((1, 1, tn), lambda bi, ji: (bi, 0, ji))],
        out_specs=pl.BlockSpec((1, 1, 128), lambda bi, ji: (bi * j + ji, 0, 0)),
        compiler_params=pltpu.CompilerParams(
            dimension_semantics=("parallel", "parallel"),
            vmem_limit_bytes=vmem_bytes),
    )(seg3, tgt3)

    s = jnp.sum(parts, axis=(0, 1))                   # (128,) tiny reduce
    return s[0] / s[1]


def ppc_ppd_losses(contrast_logits, contrast_target, temperature, ignore):
    """Returns (loss_ppc, loss_ppd) over non-ignored rows of [M, K] logits."""
    m, k = contrast_logits.shape
    # Lane-dense layout: one wrapper transpose puts rows on the 128-lane axis
    # and prototype classes on sublanes (mirrors the seg kernel structure).
    cl_t = contrast_logits.T                          # (K, M)
    tgt = contrast_target.reshape(1, m)               # native dtype, cast in-kernel

    bytes_per_lane = 2 * (k * contrast_logits.dtype.itemsize + tgt.dtype.itemsize)
    tm = _pick_lane_tile(m, bytes_per_lane, _TILE_VMEM_BUDGET, min_blocks=2)
    t = pl.cdiv(m, tm)
    needs_tail = (m % tm) != 0

    footprint = tm * bytes_per_lane + 2 * 128 * 4
    vmem_bytes = int(min(100 * 1024 * 1024, footprint + 8 * 1024 * 1024))

    parts = pl.pallas_call(
        functools.partial(_ppc_ppd_kernel, float(1.0 / temperature), int(ignore),
                          int(m), needs_tail),
        out_shape=jax.ShapeDtypeStruct((t, 1, 128), jnp.float32),
        grid=(t,),
        in_specs=[pl.BlockSpec((k, tm), lambda i: (0, i)),
                  pl.BlockSpec((1, tm), lambda i: (0, i))],
        out_specs=pl.BlockSpec((1, 1, 128), lambda i: (i, 0, 0)),
        compiler_params=pltpu.CompilerParams(
            dimension_semantics=("parallel",),
            vmem_limit_bytes=vmem_bytes),
    )(cl_t, tgt)

    s = jnp.sum(parts, axis=(0, 1))
    return s[0] / s[2], s[1] / s[2]


def pixel_prototype_ce_loss(preds, target, config):
    """JAX/Pallas equivalent of PixelPrototypeCELoss.forward."""
    alpha = 20.0 if config['use_prototype'] else 1.0
    # torch: ignore_index starts at -1 and is overwritten by ce_ignore_index
    # whenever that differs from -1 — which is simply ce_ignore_index itself.
    ignore = int(config['ce_ignore_index'])
    ppc_w = config.get('loss_ppc_weight', 0)
    ppd_w = config.get('loss_ppd_weight', 0)

    if isinstance(preds, dict):
        loss_seg = seg_ce_mean(preds['seg'], target, alpha, ignore)
        loss_ppc, loss_ppd = ppc_ppd_losses(
            preds['logits'], preds['target'], config['temperature'], ignore)
        return loss_seg + ppc_w * loss_ppc + ppd_w * loss_ppd
    return seg_ce_mean(preds, target, alpha, ignore)


# ----------------------------------------------------------------------------
# Pure-JAX reference (verification)
# ----------------------------------------------------------------------------
def _ref_masked_ce(logits, targets, scale, ignore):
    x = logits.astype(jnp.float32) * scale
    t = targets.astype(jnp.int32)
    valid = (t != ignore)
    lse = jax.scipy.special.logsumexp(x, axis=-1)
    tgt_logit = jnp.take_along_axis(
        x, jnp.clip(t, 0, x.shape[-1] - 1)[:, None], axis=-1)[:, 0]
    ce = jnp.where(valid, lse - tgt_logit, 0.0)
    return jnp.sum(ce) / jnp.sum(valid)


def _ref_loss(preds, target, config):
    alpha = 20.0 if config['use_prototype'] else 1.0
    ignore = int(config['ce_ignore_index'])
    seg = preds['seg']
    b, c, h, w = seg.shape
    seg_rows = jnp.transpose(seg, (0, 2, 3, 1)).reshape(-1, c)
    loss_seg = _ref_masked_ce(seg_rows, target.reshape(-1), alpha, ignore)

    cl = preds['logits'].astype(jnp.float32)
    ct = preds['target'].astype(jnp.int32)
    valid = (ct != ignore)
    loss_ppc = _ref_masked_ce(cl, ct, 1.0 / config['temperature'], ignore)
    gathered = jnp.take_along_axis(
        cl, jnp.clip(ct, 0, cl.shape[-1] - 1)[:, None], axis=-1)[:, 0]
    ppd = jnp.where(valid, (1.0 - gathered) ** 2, 0.0)
    loss_ppd = jnp.sum(ppd) / jnp.sum(valid)
    return (loss_seg + config['loss_ppc_weight'] * loss_ppc
            + config['loss_ppd_weight'] * loss_ppd)


# ----------------------------------------------------------------------------
if __name__ == "__main__":
    config = dict(use_prototype=True, ce_ignore_index=255, temperature=0.1,
                  loss_ppc_weight=0.01, loss_ppd_weight=0.001)

    def make_inputs(key, b, c, h, w, k_classes):
        k1, k2, k3, k4, k5 = jax.random.split(key, 5)
        seg = jax.random.normal(k1, (b, c, h, w), jnp.float32)
        target = jax.random.randint(k2, (b, h, w), 0, c)
        ign = jax.random.bernoulli(k3, 0.1, (b, h, w))
        target = jnp.where(ign, 255, target).astype(jnp.int32)
        n = b * h * w
        cl = jax.random.normal(k4, (n, k_classes), jnp.float32)
        ct = jax.random.randint(k5, (n,), 0, k_classes)
        # torch-style float prototype target that gets .long()'d
        ct = jnp.where(ign.reshape(-1), 255, ct).astype(jnp.float32)
        return {'seg': seg, 'logits': cl, 'target': ct}, target

    key = jax.random.PRNGKey(0)
    ka, kb = jax.random.split(key)

    # Config A: aligned tiles (no tail masking). Config B: exercises the
    # partial-last-tile pl.when path on both kernels.
    cases = {"A": (ka, 2, 4, 16, 16, 20), "B": (kb, 1, 5, 24, 24, 20)}
    for tag, (kk, b, c, h, w, kcls) in cases.items():
        preds, target = make_inputs(kk, b, c, h, w, kcls)

        loss = jax.block_until_ready(pixel_prototype_ce_loss(preds, target, config))
        ref = jax.block_until_ready(_ref_loss(preds, target, config))
        assert jnp.allclose(loss, ref, rtol=1e-5, atol=1e-5), (tag, loss, ref)

        # non-dict path (seg-only CrossEntropyLoss)
        loss_plain = jax.block_until_ready(
            pixel_prototype_ce_loss(preds['seg'], target, config))
        ref_plain = _ref_masked_ce(
            jnp.transpose(preds['seg'], (0, 2, 3, 1)).reshape(-1, c),
            target.reshape(-1), 20.0, 255)
        ref_plain = jax.block_until_ready(ref_plain)
        assert jnp.allclose(loss_plain, ref_plain, rtol=1e-5, atol=1e-5), (
            tag, loss_plain, ref_plain)

    print("KERNEL_OK")
</pallas_src>

<mosaic_0001>
module attributes {stable_mosaic.version = 11 : i64} {
  func.func @_seg_ce_kernel(%arg0: i32, %arg1: i32, %arg2: memref<1x4x256xf32, #tpu.memory_space<vmem>>, %arg3: memref<1x1x256xi32, #tpu.memory_space<vmem>>, %arg4: memref<1x1x128xf32, #tpu.memory_space<vmem>>) attributes {dimension_semantics = [#tpu.dimension_semantics<parallel>, #tpu.dimension_semantics<parallel>], iteration_bounds = array<i64: 2, 1>, scalar_prefetch = 0 : i64, scratch_operands = 0 : i64, tpu.core_type = #tpu.core_type<tc>, window_params = [{transform_indices = @transform_0, window_bounds = array<i64: 1, 4, 256>}, {transform_indices = @transform_1, window_bounds = array<i64: 1, 1, 256>}, {transform_indices = @transform_2, window_bounds = array<i64: 1, 1, 128>}]} {
    %c0 = arith.constant 0 : index
    %c0_0 = arith.constant 0 : index
    %c0_1 = arith.constant 0 : index
    %0 = vector.load %arg2[%c0, %c0_0, %c0_1] : memref<1x4x256xf32, #tpu.memory_space<vmem>>, vector<1x4x256xf32>
    %1 = vector.shape_cast %0 : vector<1x4x256xf32> to vector<4x256xf32>
    %cst = arith.constant 2.000000e+01 : f32
    %2 = vector.broadcast %cst : f32 to vector<4x256xf32>
    %3 = arith.mulf %1, %2 : vector<4x256xf32>
    %c0_2 = arith.constant 0 : index
    %c0_3 = arith.constant 0 : index
    %c0_4 = arith.constant 0 : index
    %4 = vector.load %arg3[%c0_2, %c0_3, %c0_4] : memref<1x1x256xi32, #tpu.memory_space<vmem>>, vector<1x1x256xi32>
    %5 = vector.shape_cast %4 : vector<1x1x256xi32> to vector<1x256xi32>
    %c255_i32 = arith.constant 255 : i32
    %6 = vector.broadcast %c255_i32 : i32 to vector<1x256xi32>
    %7 = arith.cmpi ne, %5, %6 : vector<1x256xi32>
    %cst_5 = arith.constant dense<0xFF800000> : vector<256xf32>
    %8 = vector.multi_reduction <maximumf>, %3, %cst_5 [0] : vector<4x256xf32> to vector<256xf32>
    %9 = vector.shape_cast %8 : vector<256xf32> to vector<1x256xf32>
    %10 = vector.broadcast %9 : vector<1x256xf32> to vector<4x256xf32>
    %11 = arith.subf %3, %10 : vector<4x256xf32>
    %12 = math.exp %11 : vector<4x256xf32>
    %cst_6 = arith.constant dense<0.000000e+00> : vector<256xf32>
    %13 = vector.multi_reduction <add>, %12, %cst_6 [0] : vector<4x256xf32> to vector<256xf32>
    %14 = vector.shape_cast %13 : vector<256xf32> to vector<1x256xf32>
    %15 = math.log %14 : vector<1x256xf32>
    %16 = arith.addf %15, %9 : vector<1x256xf32>
    %17 = tpu.iota {dimensions = array<i32: 0>} : vector<4x256xi32>
    %18 = vector.broadcast %5 : vector<1x256xi32> to vector<4x256xi32>
    %19 = arith.cmpi eq, %17, %18 : vector<4x256xi32>
    %cst_7 = arith.constant 0.000000e+00 : f32
    %20 = vector.broadcast %cst_7 : f32 to vector<4x256xf32>
    %21 = arith.select %19, %3, %20 : vector<4x256xi1>, vector<4x256xf32>
    %cst_8 = arith.constant dense<0.000000e+00> : vector<256xf32>
    %22 = vector.multi_reduction <add>, %21, %cst_8 [0] : vector<4x256xf32> to vector<256xf32>
    %23 = vector.shape_cast %22 : vector<256xf32> to vector<1x256xf32>
    %24 = arith.subf %16, %23 : vector<1x256xf32>
    %cst_9 = arith.constant 0.000000e+00 : f32
    %25 = vector.broadcast %cst_9 : f32 to vector<1x256xf32>
    %26 = arith.select %7, %24, %25 : vector<1x256xi1>, vector<1x256xf32>
    %27 = arith.extui %7 : vector<1x256xi1> to vector<1x256xi32>
    %28 = arith.sitofp %27 : vector<1x256xi32> to vector<1x256xf32>
    %29 = tpu.iota {dimensions = array<i32: 2>} : vector<1x1x128xi32>
    %c0_i32 = arith.constant 0 : i32
    %30 = vector.broadcast %c0_i32 : i32 to vector<1x1x128xi32>
    %31 = arith.cmpi eq, %29, %30 : vector<1x1x128xi32>
    %32 = vector.shape_cast %26 : vector<1x256xf32> to vector<1x1x256xf32>
    %cst_10 = arith.constant dense<0.000000e+00> : vector<1xf32>
    %33 = vector.multi_reduction <add>, %32, %cst_10 [1, 2] : vector<1x1x256xf32> to vector<1xf32>
    %34 = vector.shape_cast %33 : vector<1xf32> to vector<1x1x1xf32>
    %35 = vector.extract %34[0, 0, 0] : f32 from vector<1x1x1xf32>
    %c1_i32 = arith.constant 1 : i32
    %36 = vector.broadcast %c1_i32 : i32 to vector<1x1x128xi32>
    %37 = arith.cmpi eq, %29, %36 : vector<1x1x128xi32>
    %38 = vector.shape_cast %28 : vector<1x256xf32> to vector<1x1x256xf32>
    %cst_11 = arith.constant dense<0.000000e+00> : vector<1xf32>
    %39 = vector.multi_reduction <add>, %38, %cst_11 [1, 2] : vector<1x1x256xf32> to vector<1xf32>
    %40 = vector.shape_cast %39 : vector<1xf32> to vector<1x1x1xf32>
    %41 = vector.extract %40[0, 0, 0] : f32 from vector<1x1x1xf32>
    %cst_12 = arith.constant 0.000000e+00 : f32
    %42 = vector.broadcast %41 : f32 to vector<1x1x128xf32>
    %43 = vector.broadcast %cst_12 : f32 to vector<1x1x128xf32>
    %44 = arith.select %37, %42, %43 : vector<1x1x128xi1>, vector<1x1x128xf32>
    %45 = vector.broadcast %35 : f32 to vector<1x1x128xf32>
    %46 = arith.select %31, %45, %44 : vector<1x1x128xi1>, vector<1x1x128xf32>
    %c0_13 = arith.constant 0 : index
    %c0_14 = arith.constant 0 : index
    %c0_15 = arith.constant 0 : index
    %47 = vector.load %arg4[%c0_13, %c0_14, %c0_15] : memref<1x1x128xf32, #tpu.memory_space<vmem>>, vector<1x1x128xf32>
    tpu.vector_store %arg4[%c0_13, %c0_14, %c0_15], %46 {strides = array<i32>} : memref<1x1x128xf32, #tpu.memory_space<vmem>>, vector<1x1x128xf32>,
    return
  }
  func.func @transform_0(%arg0: i32, %arg1: i32) -> (i32, i32, i32) {
    %c0_i32 = arith.constant 0 : i32
    %c0_i32_0 = arith.constant 0 : i32
    return %arg0, %c0_i32, %arg1 : i32, i32, i32
  }
  func.func @transform_1(%arg0: i32, %arg1: i32) -> (i32, i32, i32) {
    %c0_i32 = arith.constant 0 : i32
    %c0_i32_0 = arith.constant 0 : i32
    return %arg0, %c0_i32, %arg1 : i32, i32, i32
  }
  func.func @transform_2(%arg0: i32, %arg1: i32) -> (i32, i32, i32) {
    %c1_i32 = arith.constant 1 : i32
    %0 = arith.muli %arg0, %c1_i32 : i32
    %1 = arith.addi %0, %arg1 : i32
    %c0_i32 = arith.constant 0 : i32
    %c0_i32_0 = arith.constant 0 : i32
    %c0_i32_1 = arith.constant 0 : i32
    return %1, %c0_i32, %c0_i32_0 : i32, i32, i32
  }
}

</mosaic_0001>

<llo_original>
// kernel: tpu_custom_call.1
$region0: #{tpu_custom_call.1}
  #allocation0 [shape = 'u32[]', space=smem, size = 0x4, offset = 0x4, fixed_abs, tag = 'smem constant byte address 0x4 - core index']
  #allocation1 [shape = 'u32[72,128]{1,0:T(1,128)}', space=vmem, size = 0x9000, scoped, tag = 'internal scratch']
  %s0 = inlined_call_operand.hbm [shape: f32[2,4,256], index: 0, kind: input, shape index: {}]
  %s1 = inlined_call_operand.hbm [shape: s32[2,1,256], index: 1, kind: input, shape index: {}]
  %s2 = inlined_call_operand.hbm [shape: f32[2,1,128], index: 2, kind: output, shape index: {}]
  %s3 = sld [smem:[#allocation0]]
  $region49: #{tpu_custom_call.1} parent=0
    _
  %s5 = ssub.s32 1, %s3
  %s6 = scalar_select 0, %s5, %s3
  $region1: #{tpu_custom_call.1} parent=0
    #allocation2 [shape = 'u8[8192]{0}', space=vmem, size = 0x2000, scoped, tag = 'input window, operand 0']
    #allocation3 [shape = 's32[2]{0}', space=sflag, size = 0x8, scoped, tag = 'scoped memory for tpu_custom_call.1']
    #allocation4 [shape = 's32[2]{0}', space=sflag, size = 0x8, scoped, tag = 'scoped memory for tpu_custom_call.1']
    #allocation5 [shape = 'u8[2048]{0}', space=vmem, size = 0x800, scoped, tag = 'input window, operand 1']
    #allocation6 [shape = 's32[2]{0}', space=sflag, size = 0x8, scoped, tag = 'scoped memory for tpu_custom_call.1']
    #allocation7 [shape = 'u8[1024]{0}', space=vmem, size = 0x400, scoped, tag = 'output window, operand 0']
    %7 = vsyncpa [#allocation3], 0
    %s8 = scalar_lea.sflag [#allocation3], 1
    %9 = vsyncpa %s8, 0
    %10 = vsyncpa [#allocation6], 0
    %s11 = scalar_lea.sflag [#allocation6], 1
    %12 = vsyncpa %s11, 0
    %13 = vsyncpa [#allocation4], 0
    %s14 = scalar_lea.sflag [#allocation4], 1
    %15 = vsyncpa %s14, 0
    loop: start=0, step=1, limit=4
    $region2: #{tpu_custom_call.1} parent=1 // loop_pre_header
      _
    $region3: #{tpu_custom_call.1} parent=1 // loop_header
      %s17 = sphi 0, %s21
      %p18 = scmp.ge.s32.totalorder %s17, 4
      %s24 = sphi 0, %s36
      %s25 = sphi 0, %s32
      %s26 = sphi 0, %s24
      %s27 = sphi 0, %s25
      %s28 = sphi 0, %s26
      %s29 = sphi 0, %s27
      %s41 = sphi 0, %s43
      %s44 = sphi 0, %s41
      %s45 = sphi 0, %s44
      %s61 = sphi 0, %s45
      %s69 = sphi 0, %s71
      %s72 = sphi 0, %s69
      %s73 = sphi 0, %s72
      %s89 = sphi 0, %s73
      %s97 = sphi 0, %s99
      %s100 = sphi 0, %s97
      %s101 = sphi 0, %s100
      %s117 = sphi 0, %s101
    $region4: #{tpu_custom_call.1} parent=1 // loop_header_branch
      %20 = sbr.rel (%p18) target = $region8
    $region5: #{tpu_custom_call.1} parent=1 // loop_body
      %s22 = ssub.s32 %s17, 1
      %s23 = ssub.s32 %s17, 2
      %s30 = sadd.s32 1, %s25
      %p31 = scmp.ge.s32.totalorder %s30, 1
      %s32 = scalar_select %p31, 0, %s30
      %s33 = sadd.s32 1, %s24
      %s34 = scalar_select %p31, %s33, %s24
      %p35 = scmp.ge.s32.totalorder %s34, 2
      %s36 = scalar_select %p35, 0, %s34
      %s37 = ssub.s32 %s24, %s36
      %s38 = ssub.s32 %s25, %s32
      %s39 = sor.u32 %s37, %s38
      %p40 = scmp.eq.s32.totalorder %s39, 0
      %s42 = sadd.s32 %s41, 1
      %s43 = scalar_select %p40, %s41, %s42
      %p46 = pneg %p40
      %p47 = scmp.eq.s32.totalorder %s17, 1
      %p48 = por %p46, %p47
      %p49 = scmp.ne.s32.totalorder %s41, %s44
      %p50 = scmp.eq.s32.totalorder %s17, 0
      %p51 = por %p49, %p50
      %p52 = scmp.ne.s32.totalorder %s41, %s44
      %p53 = scmp.eq.s32.totalorder %s22, 1
      %p54 = por %p52, %p53
      %p55 = scmp.ne.s32.totalorder %s44, %s45
      %p56 = scmp.eq.s32.totalorder %s22, 0
      %p57 = por %p55, %p56
      %p58 = scmp.ne.s32.totalorder %s44, %s45
      %p59 = scmp.eq.s32.totalorder %s23, 1
      %p60 = por %p58, %p59
      %p62 = scmp.ne.s32.totalorder %s45, %s61
      %p63 = scmp.eq.s32.totalorder %s23, 0
      %p64 = por %p62, %p63
      %s65 = ssub.s32 %s24, %s36
      %s66 = ssub.s32 %s25, %s32
      %s67 = sor.u32 %s65, %s66
      %p68 = scmp.eq.s32.totalorder %s67, 0
      %s70 = sadd.s32 %s69, 1
      %s71 = scalar_select %p68, %s69, %s70
      %p74 = pneg %p68
      %p75 = scmp.eq.s32.totalorder %s17, 1
      %p76 = por %p74, %p75
      %p77 = scmp.ne.s32.totalorder %s69, %s72
      %p78 = scmp.eq.s32.totalorder %s17, 0
      %p79 = por %p77, %p78
      %p80 = scmp.ne.s32.totalorder %s69, %s72
      %p81 = scmp.eq.s32.totalorder %s22, 1
      %p82 = por %p80, %p81
      %p83 = scmp.ne.s32.totalorder %s72, %s73
      %p84 = scmp.eq.s32.totalorder %s22, 0
      %p85 = por %p83, %p84
      %p86 = scmp.ne.s32.totalorder %s72, %s73
      %p87 = scmp.eq.s32.totalorder %s23, 1
      %p88 = por %p86, %p87
      %p90 = scmp.ne.s32.totalorder %s73, %s89
      %p91 = scmp.eq.s32.totalorder %s23, 0
      %p92 = por %p90, %p91
      %s93 = sadd.s32 %s24, %s25
      %s94 = sadd.s32 %s36, %s32
      %s95 = ssub.s32 %s93, %s94
      %p96 = scmp.eq.s32.totalorder %s95, 0
      %s98 = sadd.s32 %s97, 1
      %s99 = scalar_select %p96, %s97, %s98
      %p102 = pneg %p96
      %p103 = scmp.eq.s32.totalorder %s17, 1
      %p104 = por %p102, %p103
      %p105 = scmp.ne.s32.totalorder %s97, %s100
      %p106 = scmp.eq.s32.totalorder %s17, 0
      %p107 = por %p105, %p106
      %p108 = scmp.ne.s32.totalorder %s97, %s100
      %p109 = scmp.eq.s32.totalorder %s22, 1
      %p110 = por %p108, %p109
      %p111 = scmp.ne.s32.totalorder %s100, %s101
      %p112 = scmp.eq.s32.totalorder %s22, 0
      %p113 = por %p111, %p112
      %p114 = scmp.ne.s32.totalorder %s100, %s101
      %p115 = scmp.eq.s32.totalorder %s23, 1
      %p116 = por %p114, %p115
      %p118 = scmp.ne.s32.totalorder %s101, %s117
      %p119 = scmp.eq.s32.totalorder %s23, 0
      %p120 = por %p118, %p119
      %p121 = scmp.le.s32.totalorder 1, %s17
      %p122 = scmp.lt.s32.totalorder %s17, 3
      %p123 = pnand %p121, %p122
      %p124 = pneg %p123
      // Predicated region
      $region9: #{tpu_custom_call.1} parent=5 // pred_check
        _
      $region10: #{tpu_custom_call.1} parent=5 // pred_check_branch
        %126 = sbr.rel (%p123) target = $region12
      $region11: #{tpu_custom_call.1} parent=5 // pred_region
        %s127 = ssub.s32 %s17, 1
      $region12: #{tpu_custom_call.1} parent=5 // pred_fallthru
        _
      %p128 = scmp.lt.s32.totalorder %s17, 2
      // Predicated region
      $region13: #{tpu_custom_call.1} parent=5 // pred_check
        %p129 = pneg %p128
      $region14: #{tpu_custom_call.1} parent=5 // pred_check_branch
        %131 = sbr.rel (%p129) target = $region16
      $region15: #{tpu_custom_call.1} parent=5 // pred_region
        // Predicated region
        $region17: #{tpu_custom_call.1} parent=15 // pred_check
          %p132 = pneg %p51
        $region18: #{tpu_custom_call.1} parent=15 // pred_check_branch
          %134 = sbr.rel (%p132) target = $region20
        $region19: #{tpu_custom_call.1} parent=15 // pred_region
          %s135 = sand.u32 %s41, 1
          %s136 = scalar_lea.sflag [#allocation3], %s135
          %s137 = sand.u32 %s41, 1
          %s138 = smul.addr %s137, 8
          %s139 = scalar_lea.vmem [#allocation2], %s138
          %s140 = smul.u32 2, %s25
          %142 = vsyncadd %s136, 0
          %s143 = smul.addr %s24, 2
          %s144 = sadd.s32 %s140, %s143
          %s145 = smul.addr %s144, 4
          %s146 = scalar_lea.hbm %s0, %s145
          %s148 = sshll.u32 %s146, 4
          %s149 = int_to_ptr.hbm [resolvable:$true] %s148
          %s150 = sshll.u32 %s139, 4
          %s151 = int_to_ptr.vmem [resolvable:$true] %s150
          %153 = dma.hbm_to_vmem [thread:$0]  %s149, 128, %s151, %s136
        $region20: #{tpu_custom_call.1} parent=15 // pred_fallthru
          _
        // Predicated region
        $region21: #{tpu_custom_call.1} parent=15 // pred_check
          %p154 = pneg %p79
        $region22: #{tpu_custom_call.1} parent=15 // pred_check_branch
          %156 = sbr.rel (%p154) target = $region24
        $region23: #{tpu_custom_call.1} parent=15 // pred_region
          %s157 = sand.u32 %s69, 1
          %s158 = scalar_lea.sflag [#allocation6], %s157
          %s159 = sand.u32 %s69, 1
          %s160 = smul.addr %s159, 2
          %s161 = scalar_lea.vmem [#allocation5], %s160
          %s162 = smul.u32 2, %s25
          %164 = vsyncadd %s158, 0
          %s165 = smul.addr %s24, 2
          %s166 = sadd.s32 %s162, %s165
          %s167 = scalar_lea.hbm %s1, %s166
          %s169 = sshll.u32 %s167, 4
          %s170 = int_to_ptr.hbm [resolvable:$true] %s169
          %s171 = sshll.u32 %s161, 4
          %s172 = int_to_ptr.vmem [resolvable:$true] %s171
          %174 = dma.hbm_to_vmem [thread:$0]  %s170, 32, %s172, %s158
        $region24: #{tpu_custom_call.1} parent=15 // pred_fallthru
          _
      $region16: #{tpu_custom_call.1} parent=5 // pred_fallthru
        _
      %p175 = scmp.le.s32.totalorder 1, %s17
      %p176 = scmp.lt.s32.totalorder %s17, 3
      %p177 = pnand %p175, %p176
      %p178 = pneg %p177
      // Predicated region
      $region25: #{tpu_custom_call.1} parent=5 // pred_check
        _
      $region26: #{tpu_custom_call.1} parent=5 // pred_check_branch
        %180 = sbr.rel (%p177) target = $region28
      $region27: #{tpu_custom_call.1} parent=5 // pred_region
        %s181 = ssub.s32 %s17, 1
        %s182 = sand.u32 %s44, 1
        %s183 = scalar_lea.sflag [#allocation3], %s182
        %s184 = sand.u32 %s44, 1
        %s185 = smul.addr %s184, 8
        %s186 = scalar_lea.vmem [#allocation2], %s185
        // Predicated region
        $region29: #{tpu_custom_call.1} parent=27 // pred_check
          %p187 = pneg %p57
        $region30: #{tpu_custom_call.1} parent=27 // pred_check_branch
          %189 = sbr.rel (%p187) target = $region32
        $region31: #{tpu_custom_call.1} parent=27 // pred_region
          %191 = dma.done %s183, 128
        $region32: #{tpu_custom_call.1} parent=27 // pred_fallthru
          _
        %s192 = sand.u32 %s72, 1
        %s193 = scalar_lea.sflag [#allocation6], %s192
        %s194 = sand.u32 %s72, 1
        %s195 = smul.addr %s194, 2
        %s196 = scalar_lea.vmem [#allocation5], %s195
        // Predicated region
        $region33: #{tpu_custom_call.1} parent=27 // pred_check
          %p197 = pneg %p85
        $region34: #{tpu_custom_call.1} parent=27 // pred_check_branch
          %199 = sbr.rel (%p197) target = $region36
        $region35: #{tpu_custom_call.1} parent=27 // pred_region
          %201 = dma.done %s193, 32
        $region36: #{tpu_custom_call.1} parent=27 // pred_fallthru
          _
        %s202 = sand.u32 %s44, 1
        %s203 = scalar_lea.sflag [#allocation3], %s202
        %s204 = sand.u32 %s44, 1
        %s205 = smul.addr %s204, 8
        %s206 = scalar_lea.vmem [#allocation2], %s205
        %p207 = pneg %p57
        %p208 = pneg %p54
        %s209 = sand.u32 %s72, 1
        %s210 = scalar_lea.sflag [#allocation6], %s209
        %s211 = sand.u32 %s72, 1
        %s212 = smul.addr %s211, 2
        %s213 = scalar_lea.vmem [#allocation5], %s212
        %p214 = pneg %p85
        %p215 = pneg %p82
        %p216 = pneg %p113
        %p217 = pneg %p110
        %s218 = sand.u32 %s100, 1
        %s219 = scalar_lea.sflag [#allocation4], %s218
        %s220 = sand.u32 %s100, 1
        %s221 = scalar_lea.vmem [#allocation7], %s220
        %s222 = smul.u32 2, %s27
        %s223 = smul.u32 2, %s27
        %s224 = sadd.s32 %s26, %s27
        %v225 = vld [vmem:[%s186] sm:$0xff]
        %v226 = vmul.f32 %v225, 20.0
        %v227 = vld [vmem:[%s196] sm:$0x3]
        %vm228 = vcmp.ne.s32.totalorder %v227, 255
        %230 = vst [vmem:[#allocation1] ss:$2 sm:$0xff] %v226
        %v231 = vld.sshfl [vmem:[#allocation1] sm:$0xff pattern:$0x75316420]
        %v232 = vld.sshfl [vmem:[#allocation1 + $0x8] sm:$0xff pattern:$0x75316420]
        %vm235 = vcmask 1043456
        %v236 = vsel %vm235, %v231, -inf
        %v237 = vrot.slane %v236, 4
        %v238 = vmax.f32 %v236, %v237
        %v239 = vrot.slane %v238, 2
        %v240 = vmax.f32 %v238, %v239
        %v241 = vrot.slane %v240, 1
        %v242 = vmax.f32 %v240, %v241
        %v243 = vsel %vm235, %v232, -inf
        %v244 = vrot.slane %v243, 4
        %v245 = vmax.f32 %v243, %v244
        %v246 = vrot.slane %v245, 2
        %v247 = vmax.f32 %v245, %v246
        %v248 = vrot.slane %v247, 1
        %v249 = vmax.f32 %v247, %v248
        %v252 = vrot.slane %v249, 4
        %v253 = vsel %vm235, %v242, %v252
        %v255 = vsub.f32 %v226, %v253
        %v256 = vmul.f32 %v255, 1.442695
        %v257 = vpow.pop %v256
        %259 = vst [vmem:[#allocation1] ss:$2 sm:$0xff] %v257
        %v260 = vld.sshfl [vmem:[#allocation1] sm:$0xff pattern:$0x75316420]
        %v261 = vld.sshfl [vmem:[#allocation1 + $0x8] sm:$0xff pattern:$0x75316420]
        %v264 = vsel %vm235, %v260, 0.0
        %v265 = vrot.slane %v264, 4
        %v266 = vadd.f32 %v264, %v265
        %v267 = vrot.slane %v266, 2
        %v268 = vadd.f32 %v266, %v267
        %v269 = vrot.slane %v268, 1
        %v270 = vadd.f32 %v268, %v269
        %v271 = vsel %vm235, %v261, 0.0
        %v272 = vrot.slane %v271, 4
        %v273 = vadd.f32 %v271, %v272
        %v274 = vrot.slane %v273, 2
        %v275 = vadd.f32 %v273, %v274
        %v276 = vrot.slane %v275, 1
        %v277 = vadd.f32 %v275, %v276
        %v278 = vlog2.pop %v270
        %v279 = vmul.f32 %v278, 0.6931472
        %v280 = vlog2.pop %v277
        %v281 = vmul.f32 %v280, 0.6931472
        %v282 = vadd.f32 %v279, %v242
        %v283 = vadd.f32 %v281, %v249
        %v284 = vlaneseq
        %v285 = vshrl.u32 %v284, 7
        %v286 = vperm.slane %v227, 0
        %v287 = vperm.slane %v227, 1
        %vm288 = vcmp.eq.s32.totalorder %v285, %v286
        %vm289 = vcmp.eq.s32.totalorder %v285, %v287
        %290 = vst [vmem:[#allocation1] ss:$2 sm:$0xff] %v226
        %v291 = vld.sshfl [vmem:[#allocation1] sm:$0xff pattern:$0x75316420]
        %v292 = vld.sshfl [vmem:[#allocation1 + $0x8] sm:$0xff pattern:$0x75316420]
        %v295 = vsel %vm288, %v291, 0.0
        %v296 = vsel %vm289, %v292, 0.0
        %v297 = vsel %vm235, %v295, 0.0
        %v298 = vrot.slane %v297, 4
        %v299 = vadd.f32 %v297, %v298
        %v300 = vrot.slane %v299, 2
        %v301 = vadd.f32 %v299, %v300
        %v302 = vrot.slane %v301, 1
        %v303 = vadd.f32 %v301, %v302
        %v304 = vsel %vm235, %v296, 0.0
        %v305 = vrot.slane %v304, 4
        %v306 = vadd.f32 %v304, %v305
        %v307 = vrot.slane %v306, 2
        %v308 = vadd.f32 %v306, %v307
        %v309 = vrot.slane %v308, 1
        %v310 = vadd.f32 %v308, %v309
        %v311 = vsub.f32 %v282, %v303
        %v312 = vsub.f32 %v283, %v310
        %v315 = vrot.slane %v312, 7
        %vm316 = vcmask 1040384
        %v317 = vsel %vm316, %v311, %v315
        %v319 = vsel %vm228, %v317, 0.0
        %v320 = vsel %vm228, 1, 0
        %v321 = vcvt.s32.f32 %v320
        %v322 = vlaneseq
        %v323 = vand.u32 %v322, 127
        %vm324 = vcmp.eq.s32.totalorder %v323, 0
        %v326 = vperm.slane %v319, 0
        %v327 = vperm.slane %v319, 1
        %v330 = vsel %vm316, %v326, 0.0
        %v331 = vsel %vm316, %v327, 0.0
        %v332 = vadd.f32 %v330, %v331
        %333 = vadd.xlane.f32.xlu0 %v332
        %v334 = vpop.xlane.xlu0 %333
        %v335 = vrot.slane %v334, 4
        %v336 = vadd.f32 %v334, %v335
        %v337 = vrot.slane %v336, 2
        %v338 = vadd.f32 %v336, %v337
        %v339 = vrot.slane %v338, 1
        %v340 = vadd.f32 %v338, %v339
        %s341 = vtos %v340
        %vm342 = vcmp.eq.s32.totalorder %v323, 1
        %v344 = vperm.slane %v321, 0
        %v345 = vperm.slane %v321, 1
        %v348 = vsel %vm316, %v344, 0.0
        %v349 = vsel %vm316, %v345, 0.0
        %v350 = vadd.f32 %v348, %v349
        %351 = vadd.xlane.f32.xlu0 %v350
        %v352 = vpop.xlane.xlu0 %351
        %v353 = vrot.slane %v352, 4
        %v354 = vadd.f32 %v352, %v353
        %v355 = vrot.slane %v354, 2
        %v356 = vadd.f32 %v354, %v355
        %v357 = vrot.slane %v356, 1
        %v358 = vadd.f32 %v356, %v357
        %s359 = vtos %v358
        %v360 = vstv %s359
        %v361 = vsel %vm342, %v360, 0.0
        %v362 = vstv %s341
        %v363 = vsel %vm324, %v362, %v361
        %364 = vst [vmem:[%s221] sm:$0x1] %v363
        %s365 = sand.u32 %s100, 1
        %s366 = scalar_lea.sflag [#allocation4], %s365
        %s367 = sand.u32 %s100, 1
        %s368 = scalar_lea.vmem [#allocation7], %s367
        // Predicated region
        $region37: #{tpu_custom_call.1} parent=27 // pred_check
          %p369 = pneg %p110
        $region38: #{tpu_custom_call.1} parent=27 // pred_check_branch
          %371 = sbr.rel (%p369) target = $region40
        $region39: #{tpu_custom_call.1} parent=27 // pred_region
          %s372 = sadd.s32 %s26, %s27
          %374 = vsyncadd %s366, 0
          %s375 = scalar_lea.hbm %s2, %s372
          %s377 = sshll.u32 %s368, 4
          %s378 = int_to_ptr.vmem [resolvable:$true] %s377
          %s379 = sshll.u32 %s375, 4
          %s380 = int_to_ptr.hbm [resolvable:$true] %s379
          %382 = dma.vmem_to_hbm [thread:$0]  %s378, 16, %s380, %s366
        $region40: #{tpu_custom_call.1} parent=27 // pred_fallthru
          _
      $region28: #{tpu_custom_call.1} parent=5 // pred_fallthru
        _
      %p383 = scmp.le.s32.totalorder 2, %s17
      // Predicated region
      $region41: #{tpu_custom_call.1} parent=5 // pred_check
        %p384 = pneg %p383
      $region42: #{tpu_custom_call.1} parent=5 // pred_check_branch
        %386 = sbr.rel (%p384) target = $region44
      $region43: #{tpu_custom_call.1} parent=5 // pred_region
        %s387 = ssub.s32 %s17, 2
        // Predicated region
        $region45: #{tpu_custom_call.1} parent=43 // pred_check
          %p388 = pneg %p116
        $region46: #{tpu_custom_call.1} parent=43 // pred_check_branch
          %390 = sbr.rel (%p388) target = $region48
        $region47: #{tpu_custom_call.1} parent=43 // pred_region
          %s391 = sand.u32 %s101, 1
          %s392 = scalar_lea.sflag [#allocation4], %s391
          %s393 = sand.u32 %s101, 1
          %s394 = scalar_lea.vmem [#allocation7], %s393
          %396 = dma.done %s392, 16
        $region48: #{tpu_custom_call.1} parent=43 // pred_fallthru
          _
      $region44: #{tpu_custom_call.1} parent=5 // pred_fallthru
        _
    $region6: #{tpu_custom_call.1} parent=1 // loop_footer
      %s21 = sadd.s32 1, %s17
    $region7: #{tpu_custom_call.1} parent=1 // loop_footer_branch
      %16 = sbr.rel target = $region3
    $region8: #{tpu_custom_call.1} parent=1 // loop_exit
      _
    %397 = vsyncpa [#allocation3], 1
    %s398 = scalar_lea.sflag [#allocation3], 1
    %399 = vsyncpa %s398, 1
    %400 = vsyncpa [#allocation6], 1
    %s401 = scalar_lea.sflag [#allocation6], 1
    %402 = vsyncpa %s401, 1
    %403 = vsyncpa [#allocation4], 1
    %s404 = scalar_lea.sflag [#allocation4], 1
    %405 = vsyncpa %s404, 1

</llo_original>
